<compile_context>
chip_gen: v7x
topology: tpu7x:2x2x1
jax: 0.10.0
libtpu: 0.0.40
codegen_flags: <defaults>
</compile_context>

<pallas_src>
import jax
import jax.numpy as jnp
from jax.experimental import pallas as pl
from jax.experimental.pallas import tpu as pltpu


def _round_up(x, m):
    return (x + m - 1) // m * m


def _stats_kernel(p_ref, w_ref, stats_ref):
    """ReLU -> packed im2col matmul -> per-tile column (sum, sum-of-squares).

    p_ref:     (TMg, Ktot)   packed im2col rows (P pixels per row), zero-padded
    w_ref:     (Ktot, Cp)    block-diagonal flattened conv weights
    stats_ref: (1, 2, Cp)    row 0 = column sums, row 1 = column sums of squares
    """
    x = jnp.maximum(p_ref[...], 0.0)              # ReLU commutes with im2col
    acc = jnp.dot(x, w_ref[...], preferred_element_type=jnp.float32)
    s = jnp.sum(acc, axis=0, keepdims=True)       # (1, Cp)
    sq = jnp.sum(acc * acc, axis=0, keepdims=True)
    stats_ref[...] = jnp.concatenate([s, sq], axis=0).reshape(1, 2, acc.shape[1])


def _bn_apply_kernel(p_ref, w_ref, scale_ref, shift_ref, o_ref):
    """Recompute ReLU + matmul, then y = conv * scale + shift (lane-dense)."""
    x = jnp.maximum(p_ref[...], 0.0)
    acc = jnp.dot(x, w_ref[...], preferred_element_type=jnp.float32)
    o_ref[...] = (acc * scale_ref[...] + shift_ref[...]).astype(o_ref.dtype)


def relu_conv_bn(x_nchw, weight_oihw, gamma, beta, *, stride=1, padding=1,
                 dilation=1, eps=1e-5, row_tile=512, use_bf16=True):
    """NCHW in / NCHW out, matching nn.Sequential(ReLU, Conv2d(bias=False), BN)."""
    N, Cin, H, W = x_nchw.shape
    Cout, _, KH, KW = weight_oihw.shape
    Hout = (H + 2 * padding - dilation * (KH - 1) - 1) // stride + 1
    Wout = (W + 2 * padding - dilation * (KW - 1) - 1) // stride + 1
    M = N * Hout * Wout
    Kdim = KH * KW * Cin

    # Pack P output pixels per output row so the store lane dim is a dense
    # multiple of 128 even when Cout << 128 (Cout=8 -> P=16, zero channel pad).
    if 128 % Cout == 0:
        P = 128 // Cout
        Cp = 128
    else:
        P = 1
        Cp = _round_up(Cout, 128)
    Ktot = _round_up(P * Kdim, 32)                 # bf16/int8 sublane-safe

    Mg = -(-M // P)                                # packed (grouped) rows
    # Keep >= 2 grid steps when possible so v7x's two TensorCores both get work.
    TMg = max(8, min(_round_up(row_tile, 8), _round_up(-(-Mg // 2), 8)))
    Mg_pad = _round_up(Mg, TMg)
    n_tiles = Mg_pad // TMg

    mat_dtype = jnp.bfloat16 if use_bf16 else jnp.float32
    isz = jnp.dtype(mat_dtype).itemsize

    # ---- glue: layout, zero pad, im2col gather, pixel packing (XLA) ----
    # TODO(synk): for large realistic shapes, build the KH*KW taps inside the
    # kernel from x_nhwc halo rows instead of materializing im2col in HBM.
    x_nhwc = jnp.transpose(x_nchw, (0, 2, 3, 1))
    x_pad = jnp.pad(
        x_nhwc, ((0, 0), (padding, padding), (padding, padding), (0, 0)))
    taps = []
    for kh in range(KH):
        for kw in range(KW):
            h0 = kh * dilation
            w0 = kw * dilation
            taps.append(x_pad[:, h0:h0 + (Hout - 1) * stride + 1:stride,
                                 w0:w0 + (Wout - 1) * stride + 1:stride, :])
    patches = jnp.concatenate(taps, axis=-1).reshape(M, Kdim)        # (M, Kdim)
    patches = jnp.pad(patches, ((0, Mg_pad * P - M), (0, 0)))
    pgrp = patches.reshape(Mg_pad, P * Kdim)                          # free reshape
    pgrp = jnp.pad(pgrp, ((0, 0), (0, Ktot - P * Kdim))).astype(mat_dtype)

    # Block-diagonal weight: patch segment p feeds output columns [p*Cout, (p+1)*Cout).
    w_flat = jnp.transpose(weight_oihw, (2, 3, 1, 0)).reshape(Kdim, Cout)
    w_bd = jnp.kron(jnp.eye(P, dtype=jnp.float32), w_flat.astype(jnp.float32))
    w_bd = jnp.pad(w_bd, ((0, Ktot - P * Kdim), (0, Cp - P * Cout)))
    w_bd = w_bd.astype(mat_dtype)

    # VMEM sized to the double-buffered tiles; 48 MiB cap stays inside v7x's
    # 64 MiB per-core VMEM (v5e/v6e have 128 MiB so the cap never hurts there).
    vmem_need = 2 * (TMg * Ktot * isz + Ktot * Cp * isz + TMg * Cp * 4 + 4 * Cp * 4)
    vmem_limit = max(16 << 20, min(int(1.5 * vmem_need) + (4 << 20), 48 << 20))
    cparams = pltpu.CompilerParams(dimension_semantics=("parallel",),
                                   vmem_limit_bytes=vmem_limit)

    flops = 2 * Mg_pad * Ktot * Cp
    p_bytes = Mg_pad * Ktot * isz
    w_bytes = Ktot * Cp * isz

    # ---- pass 1: ReLU -> conv matmul -> per-tile (sum, sumsq) only ----------
    stats = pl.pallas_call(
        _stats_kernel,
        out_shape=jax.ShapeDtypeStruct((n_tiles, 2, Cp), jnp.float32),
        grid=(n_tiles,),
        in_specs=[pl.BlockSpec((TMg, Ktot), lambda i: (i, 0)),
                  pl.BlockSpec((Ktot, Cp), lambda i: (0, 0))],
        out_specs=pl.BlockSpec((1, 2, Cp), lambda i: (i, 0, 0)),
        compiler_params=cparams,
        cost_estimate=pl.CostEstimate(
            flops=flops, transcendentals=0,
            bytes_accessed=p_bytes + w_bytes + n_tiles * 2 * Cp * 4),
    )(pgrp, w_bd)

    # ---- fold batch stats into one per-channel scale/shift (tiny, XLA) ------
    # Padded rows / pixels are all-zero -> contribute 0 to both sums; divide by
    # the true pixel count M.
    totals = jnp.sum(stats, axis=0)                          # (2, Cp)
    ch = totals[:, :P * Cout].reshape(2, P, Cout).sum(axis=1)  # (2, Cout)
    mean = ch[0] / M
    # NOTE: single-pass E[x^2] - E[x]^2 in f32 (clamped); fine at these
    # magnitudes, can lose precision when |mean| >> std at very large M.
    var = jnp.maximum(ch[1] / M - mean * mean, 0.0)
    scale = gamma.astype(jnp.float32) * jax.lax.rsqrt(var + eps)
    shift = beta.astype(jnp.float32) - mean * scale
    scale_p = jnp.pad(jnp.tile(scale, P), (0, Cp - P * Cout),
                      constant_values=1.0).reshape(1, Cp)
    shift_p = jnp.pad(jnp.tile(shift, P), (0, Cp - P * Cout)).reshape(1, Cp)

    # ---- pass 2: recompute ReLU+matmul, folded BN, single lane-dense store ---
    y = pl.pallas_call(
        _bn_apply_kernel,
        out_shape=jax.ShapeDtypeStruct((Mg_pad, Cp), jnp.float32),
        grid=(n_tiles,),
        in_specs=[pl.BlockSpec((TMg, Ktot), lambda i: (i, 0)),
                  pl.BlockSpec((Ktot, Cp), lambda i: (0, 0)),
                  pl.BlockSpec((1, Cp), lambda i: (0, 0)),
                  pl.BlockSpec((1, Cp), lambda i: (0, 0))],
        out_specs=pl.BlockSpec((TMg, Cp), lambda i: (i, 0)),
        compiler_params=cparams,
        cost_estimate=pl.CostEstimate(
            flops=flops, transcendentals=0,
            bytes_accessed=p_bytes + w_bytes + 2 * Cp * 4 + Mg_pad * Cp * 4),
    )(pgrp, w_bd, scale_p, shift_p)

    # ---- glue: unpack pixels, strip padding, back to NCHW --------------------
    y_pix = y[:, :P * Cout].reshape(Mg_pad * P, Cout)[:M]
    out_nhwc = y_pix.reshape(N, Hout, Wout, Cout)
    return jnp.transpose(out_nhwc, (0, 3, 1, 2))


def _reference(x, w, gamma, beta, *, stride, padding, dilation, eps):
    """Pure-JAX reference reproducing the PyTorch forward (train-mode BN)."""
    xr = jnp.maximum(x, 0.0)
    y = jax.lax.conv_general_dilated(
        xr, w, window_strides=(stride, stride),
        padding=((padding, padding), (padding, padding)),
        rhs_dilation=(dilation, dilation),
        dimension_numbers=("NCHW", "OIHW", "NCHW"))
    mean = jnp.mean(y, axis=(0, 2, 3), keepdims=True)
    var = jnp.mean((y - mean) ** 2, axis=(0, 2, 3), keepdims=True)
    yn = (y - mean) * jax.lax.rsqrt(var + eps)
    return yn * gamma.reshape(1, -1, 1, 1) + beta.reshape(1, -1, 1, 1)


if __name__ == "__main__":
    # ReLUConvBN(C_in=4, C_out=8, kernel_size=3, stride=1, padding=1, dilation=1)
    N, C_in, H, W = 2, 4, 16, 16
    C_out, K = 8, 3
    stride, padding, dilation = 1, 1, 1
    eps = 1e-5

    key = jax.random.PRNGKey(0)
    kx, kw = jax.random.split(key)
    x = jax.random.normal(kx, (N, C_in, H, W), dtype=jnp.float32)
    weight = 0.1 * jax.random.normal(kw, (C_out, C_in, K, K), dtype=jnp.float32)
    gamma = jnp.ones((C_out,), dtype=jnp.float32)    # BN affine defaults
    beta = jnp.zeros((C_out,), dtype=jnp.float32)

    ref = _reference(x, weight, gamma, beta, stride=stride, padding=padding,
                     dilation=dilation, eps=eps)

    # Default bf16-operand MXU path (f32 accumulation / f32 BN math).
    out = relu_conv_bn(x, weight, gamma, beta, stride=stride, padding=padding,
                       dilation=dilation, eps=eps)
    out = jax.block_until_ready(out)
    Hout = (H + 2 * padding - dilation * (K - 1) - 1) // stride + 1
    Wout = (W + 2 * padding - dilation * (K - 1) - 1) // stride + 1
    assert out.shape == (N, C_out, Hout, Wout)
    assert float(jnp.max(jnp.abs(out - ref))) < 0.25, "bf16 path mismatch vs reference"

    # f32 MXU path: exact-tolerance check against the reference.
    out_f32 = jax.block_until_ready(
        relu_conv_bn(x, weight, gamma, beta, stride=stride, padding=padding,
                     dilation=dilation, eps=eps, use_bf16=False))
    assert jnp.allclose(out_f32, ref, atol=1e-4, rtol=1e-4), "f32 mismatch vs reference"

    print("KERNEL_OK")
</pallas_src>

<mosaic_0001>
module attributes {stable_mosaic.version = 11 : i64} {
  func.func @_stats_kernel(%arg0: i32, %arg1: memref<16x576xbf16, #tpu.memory_space<vmem>>, %arg2: memref<576x128xbf16, #tpu.memory_space<vmem>>, %arg3: memref<1x2x128xf32, #tpu.memory_space<vmem>>) attributes {dimension_semantics = [#tpu.dimension_semantics<parallel>], iteration_bounds = array<i64: 2>, scalar_prefetch = 0 : i64, scratch_operands = 0 : i64, tpu.core_type = #tpu.core_type<tc>, window_params = [{transform_indices = @transform_0, window_bounds = array<i64: 16, 576>}, {pipeline_mode = #tpu.pipeline_mode<synchronous>, transform_indices = @transform_1, window_bounds = array<i64: 576, 128>}, {transform_indices = @transform_2, window_bounds = array<i64: 1, 2, 128>}]} {
    %c0 = arith.constant 0 : index
    %c0_0 = arith.constant 0 : index
    %0 = vector.load %arg1[%c0, %c0_0] : memref<16x576xbf16, #tpu.memory_space<vmem>>, vector<16x576xbf16>
    %cst = arith.constant 0.000000e+00 : bf16
    %1 = vector.broadcast %cst : bf16 to vector<16x576xbf16>
    %2 = arith.maximumf %0, %1 : vector<16x576xbf16>
    %c0_1 = arith.constant 0 : index
    %c0_2 = arith.constant 0 : index
    %3 = vector.load %arg2[%c0_1, %c0_2] : memref<576x128xbf16, #tpu.memory_space<vmem>>, vector<576x128xbf16>
    %cst_3 = arith.constant dense<0.000000e+00> : vector<16x128xf32>
    %4 = tpu.matmul %2, %3, %cst_3 {dimension_numbers = #tpu.dot_dimension_numbers<[1], [0], [0], [1], [0, 0, 1, 1], [], []>} : vector<16x576xbf16>, vector<576x128xbf16>, vector<16x128xf32> -> vector<16x128xf32>
    %cst_4 = arith.constant dense<0.000000e+00> : vector<128xf32>
    %5 = vector.multi_reduction <add>, %4, %cst_4 [0] : vector<16x128xf32> to vector<128xf32>
    %6 = vector.shape_cast %5 : vector<128xf32> to vector<1x128xf32>
    %7 = arith.mulf %4, %4 : vector<16x128xf32>
    %cst_5 = arith.constant dense<0.000000e+00> : vector<128xf32>
    %8 = vector.multi_reduction <add>, %7, %cst_5 [0] : vector<16x128xf32> to vector<128xf32>
    %9 = vector.shape_cast %8 : vector<128xf32> to vector<1x128xf32>
    %10 = tpu.concatenate %6, %9 in 0 : vector<1x128xf32>, vector<1x128xf32> -> vector<2x128xf32>
    %11 = vector.shape_cast %10 : vector<2x128xf32> to vector<1x2x128xf32>
    %c0_6 = arith.constant 0 : index
    %c0_7 = arith.constant 0 : index
    %c0_8 = arith.constant 0 : index
    %12 = vector.load %arg3[%c0_6, %c0_7, %c0_8] : memref<1x2x128xf32, #tpu.memory_space<vmem>>, vector<1x2x128xf32>
    tpu.vector_store %arg3[%c0_6, %c0_7, %c0_8], %11 {strides = array<i32>} : memref<1x2x128xf32, #tpu.memory_space<vmem>>, vector<1x2x128xf32>,
    return
  }
  func.func @transform_0(%arg0: i32) -> (i32, i32) {
    %c0_i32 = arith.constant 0 : i32
    %c0_i32_0 = arith.constant 0 : i32
    return %arg0, %c0_i32 : i32, i32
  }
  func.func @transform_1(%arg0: i32) -> (i32, i32) {
    %c0_i32 = arith.constant 0 : i32
    %c0_i32_0 = arith.constant 0 : i32
    %c0_i32_1 = arith.constant 0 : i32
    return %c0_i32, %c0_i32_0 : i32, i32
  }
  func.func @transform_2(%arg0: i32) -> (i32, i32, i32) {
    %c0_i32 = arith.constant 0 : i32
    %c0_i32_0 = arith.constant 0 : i32
    %c0_i32_1 = arith.constant 0 : i32
    return %arg0, %c0_i32, %c0_i32_0 : i32, i32, i32
  }
}

</mosaic_0001>

<llo_original>
// kernel: tpu_custom_call.1
$region0: #{tpu_custom_call.1}
  #allocation0 [shape = 'u32[]', space=smem, size = 0x4, offset = 0x4, fixed_abs, tag = 'smem constant byte address 0x4 - core index']
  #allocation1 [shape = 'u32[144,128]{1,0:T(1,128)}', space=vmem, size = 0x12000, scoped, tag = 'internal scratch']
  %s0 = inlined_call_operand.hbm [shape: bf16[32,576], index: 0, kind: input, shape index: {}]
  %s1 = inlined_call_operand.hbm [shape: bf16[576,128], index: 1, kind: input, shape index: {}]
  %s2 = inlined_call_operand.hbm [shape: f32[2,2,128], index: 2, kind: output, shape index: {}]
  %s3 = sld [smem:[#allocation0]]
  $region49: #{tpu_custom_call.1} parent=0
    _
  %s5 = ssub.s32 1, %s3
  %s6 = scalar_select 0, %s5, %s3
  $region1: #{tpu_custom_call.1} parent=0
    #allocation2 [shape = 'u8[40960]{0}', space=vmem, size = 0xa000, scoped, tag = 'input window, operand 0']
    #allocation3 [shape = 's32[2]{0}', space=sflag, size = 0x8, scoped, tag = 'scoped memory for tpu_custom_call.1']
    #allocation4 [shape = 's32[2]{0}', space=sflag, size = 0x8, scoped, tag = 'scoped memory for tpu_custom_call.1']
    #allocation5 [shape = 'u8[147456]{0}', space=vmem, size = 0x24000, scoped, tag = 'input window, operand 1, single buffered']
    #allocation6 [shape = 's32[1]{0}', space=sflag, size = 0x4, scoped, tag = 'scoped memory for tpu_custom_call.1']
    #allocation7 [shape = 'u8[2048]{0}', space=vmem, size = 0x800, scoped, tag = 'output window, operand 0']
    %7 = vsyncpa [#allocation3], 0
    %s8 = scalar_lea.sflag [#allocation3], 1
    %9 = vsyncpa %s8, 0
    %10 = vsyncpa [#allocation6], 0
    %11 = vsyncpa [#allocation4], 0
    %s12 = scalar_lea.sflag [#allocation4], 1
    %13 = vsyncpa %s12, 0
    loop: start=0, step=1, limit=4
    $region2: #{tpu_custom_call.1} parent=1 // loop_pre_header
      _
    $region3: #{tpu_custom_call.1} parent=1 // loop_header
      %s15 = sphi 0, %s19
      %p16 = scmp.ge.s32.totalorder %s15, 4
      %s25 = sphi 0, %s27
      %s28 = sphi 0, %s25
      %s29 = sphi 0, %s28
      %s45 = sphi 0, %s29
      %s49 = sphi 0, %s49
      %s51 = sphi 0, %s49
      %s52 = sphi 0, %s51
      %s66 = sphi 0, %s52
      %s72 = sphi 0, %s74
      %s75 = sphi 0, %s72
      %s76 = sphi 0, %s75
      %s92 = sphi 0, %s76
    $region4: #{tpu_custom_call.1} parent=1 // loop_header_branch
      %18 = sbr.rel (%p16) target = $region8
    $region5: #{tpu_custom_call.1} parent=1 // loop_body
      %s20 = ssub.s32 %s15, 1
      %s21 = ssub.s32 %s15, 2
      %s22 = sadd.s32 %s15, 1
      %s23 = ssub.s32 %s15, %s22
      %p24 = scmp.eq.s32.totalorder %s23, 0
      %s26 = sadd.s32 %s25, 1
      %s27 = scalar_select %p24, %s25, %s26
      %p30 = pneg %p24
      %p31 = scmp.eq.s32.totalorder %s15, 1
      %p32 = por %p30, %p31
      %p33 = scmp.ne.s32.totalorder %s25, %s28
      %p34 = scmp.eq.s32.totalorder %s15, 0
      %p35 = por %p33, %p34
      %p36 = scmp.ne.s32.totalorder %s25, %s28
      %p37 = scmp.eq.s32.totalorder %s20, 1
      %p38 = por %p36, %p37
      %p39 = scmp.ne.s32.totalorder %s28, %s29
      %p40 = scmp.eq.s32.totalorder %s20, 0
      %p41 = por %p39, %p40
      %p42 = scmp.ne.s32.totalorder %s28, %s29
      %p43 = scmp.eq.s32.totalorder %s21, 1
      %p44 = por %p42, %p43
      %p46 = scmp.ne.s32.totalorder %s29, %s45
      %p47 = scmp.eq.s32.totalorder %s21, 0
      %p48 = por %p46, %p47
      %s50 = sadd.s32 %s49, 1
      %p53 = scmp.eq.s32.totalorder %s15, 1
      %p54 = scmp.ne.s32.totalorder %s49, %s51
      %p55 = scmp.eq.s32.totalorder %s15, 0
      %p56 = por %p54, %p55
      %p57 = scmp.ne.s32.totalorder %s49, %s51
      %p58 = scmp.eq.s32.totalorder %s20, 1
      %p59 = por %p57, %p58
      %p60 = scmp.ne.s32.totalorder %s51, %s52
      %p61 = scmp.eq.s32.totalorder %s20, 0
      %p62 = por %p60, %p61
      %p63 = scmp.ne.s32.totalorder %s51, %s52
      %p64 = scmp.eq.s32.totalorder %s21, 1
      %p65 = por %p63, %p64
      %p67 = scmp.ne.s32.totalorder %s52, %s66
      %p68 = scmp.eq.s32.totalorder %s21, 0
      %p69 = por %p67, %p68
      %s70 = ssub.s32 %s15, %s22
      %p71 = scmp.eq.s32.totalorder %s70, 0
      %s73 = sadd.s32 %s72, 1
      %s74 = scalar_select %p71, %s72, %s73
      %p77 = pneg %p71
      %p78 = scmp.eq.s32.totalorder %s15, 1
      %p79 = por %p77, %p78
      %p80 = scmp.ne.s32.totalorder %s72, %s75
      %p81 = scmp.eq.s32.totalorder %s15, 0
      %p82 = por %p80, %p81
      %p83 = scmp.ne.s32.totalorder %s72, %s75
      %p84 = scmp.eq.s32.totalorder %s20, 1
      %p85 = por %p83, %p84
      %p86 = scmp.ne.s32.totalorder %s75, %s76
      %p87 = scmp.eq.s32.totalorder %s20, 0
      %p88 = por %p86, %p87
      %p89 = scmp.ne.s32.totalorder %s75, %s76
      %p90 = scmp.eq.s32.totalorder %s21, 1
      %p91 = por %p89, %p90
      %p93 = scmp.ne.s32.totalorder %s76, %s92
      %p94 = scmp.eq.s32.totalorder %s21, 0
      %p95 = por %p93, %p94
      %p96 = scmp.le.s32.totalorder 1, %s15
      %p97 = scmp.lt.s32.totalorder %s15, 3
      %p98 = pnand %p96, %p97
      %p99 = pneg %p98
      // Predicated region
      $region9: #{tpu_custom_call.1} parent=5 // pred_check
        _
      $region10: #{tpu_custom_call.1} parent=5 // pred_check_branch
        %101 = sbr.rel (%p98) target = $region12
      $region11: #{tpu_custom_call.1} parent=5 // pred_region
        %s102 = ssub.s32 %s15, 1
        // Predicated region
        $region13: #{tpu_custom_call.1} parent=11 // pred_check
          %p103 = pneg %p62
        $region14: #{tpu_custom_call.1} parent=11 // pred_check_branch
          %105 = sbr.rel (%p103) target = $region16
        $region15: #{tpu_custom_call.1} parent=11 // pred_region
          %s107 = ssub.s32 4608, 4608
          %108 = vsyncadd [#allocation6], %s107
          %s109 = sshll.u32 [#allocation5], 4
          %s110 = int_to_ptr.vmem [resolvable:$true] %s109
          %115 = dma.hbm_to_vmem [thread:$0]  %s1, 4608, %s110, [#allocation6], 64, 64, 4
        $region16: #{tpu_custom_call.1} parent=11 // pred_fallthru
          _
      $region12: #{tpu_custom_call.1} parent=5 // pred_fallthru
        _
      %p116 = scmp.lt.s32.totalorder %s15, 2
      // Predicated region
      $region17: #{tpu_custom_call.1} parent=5 // pred_check
        %p117 = pneg %p116
      $region18: #{tpu_custom_call.1} parent=5 // pred_check_branch
        %119 = sbr.rel (%p117) target = $region20
      $region19: #{tpu_custom_call.1} parent=5 // pred_region
        // Predicated region
        $region21: #{tpu_custom_call.1} parent=19 // pred_check
          %p120 = pneg %p35
        $region22: #{tpu_custom_call.1} parent=19 // pred_check_branch
          %122 = sbr.rel (%p120) target = $region24
        $region23: #{tpu_custom_call.1} parent=19 // pred_region
          %s123 = sand.u32 %s25, 1
          %s124 = scalar_lea.sflag [#allocation3], %s123
          %s125 = sand.u32 %s25, 1
          %s126 = smul.addr %s125, 40
          %s127 = scalar_lea.vmem [#allocation2], %s126
          %s128 = smul.u32 2, %s15
          %s130 = ssub.s32 640, 640
          %131 = vsyncadd %s124, %s130
          %s132 = smul.addr %s128, 5
          %s133 = smul.addr %s132, 64
          %s134 = scalar_lea.hbm %s0, %s133
          %s135 = sshll.u32 %s127, 4
          %s136 = int_to_ptr.vmem [resolvable:$true] %s135
          %141 = dma.hbm_to_vmem [thread:$0]  %s134, 640, %s136, %s124, 320, 320, 20
        $region24: #{tpu_custom_call.1} parent=19 // pred_fallthru
          _
      $region20: #{tpu_custom_call.1} parent=5 // pred_fallthru
        _
      %p142 = scmp.le.s32.totalorder 1, %s15
      %p143 = scmp.lt.s32.totalorder %s15, 3
      %p144 = pnand %p142, %p143
      %p145 = pneg %p144
      // Predicated region
      $region25: #{tpu_custom_call.1} parent=5 // pred_check
        _
      $region26: #{tpu_custom_call.1} parent=5 // pred_check_branch
        %147 = sbr.rel (%p144) target = $region28
      $region27: #{tpu_custom_call.1} parent=5 // pred_region
        %s148 = ssub.s32 %s15, 1
        %s149 = sand.u32 %s28, 1
        %s150 = scalar_lea.sflag [#allocation3], %s149
        %s151 = sand.u32 %s28, 1
        %s152 = smul.addr %s151, 40
        %s153 = scalar_lea.vmem [#allocation2], %s152
        // Predicated region
        $region29: #{tpu_custom_call.1} parent=27 // pred_check
          %p154 = pneg %p41
        $region30: #{tpu_custom_call.1} parent=27 // pred_check_branch
          %156 = sbr.rel (%p154) target = $region32
        $region31: #{tpu_custom_call.1} parent=27 // pred_region
          %157 = dma.done %s150, 640
        $region32: #{tpu_custom_call.1} parent=27 // pred_fallthru
          _
        // Predicated region
        $region33: #{tpu_custom_call.1} parent=27 // pred_check
          %p158 = pneg %p62
        $region34: #{tpu_custom_call.1} parent=27 // pred_check_branch
          %160 = sbr.rel (%p158) target = $region36
        $region35: #{tpu_custom_call.1} parent=27 // pred_region
          %161 = dma.done [#allocation6], 4608
        $region36: #{tpu_custom_call.1} parent=27 // pred_fallthru
          _
        %s162 = sand.u32 %s28, 1
        %s163 = scalar_lea.sflag [#allocation3], %s162
        %s164 = sand.u32 %s28, 1
        %s165 = smul.addr %s164, 40
        %s166 = scalar_lea.vmem [#allocation2], %s165
        %p167 = pneg %p41
        %p168 = pneg %p38
        %p169 = pneg %p62
        %p170 = pneg %p59
        %p171 = pneg %p88
        %p172 = pneg %p85
        %s173 = sand.u32 %s75, 1
        %s174 = scalar_lea.sflag [#allocation4], %s173
        %s175 = sand.u32 %s75, 1
        %s176 = smul.addr %s175, 2
        %s177 = scalar_lea.vmem [#allocation7], %s176
        %s178 = smul.u32 2, %s20
        %v180 = vld [vmem:[%s153] sm:$0xff]
        %v181 = vld [vmem:[%s153 + $0x8] sm:$0xff]
        %v182 = vld [vmem:[%s153 + $0x10] sm:$0xf]
        %v183 = vld [vmem:[%s153 + $0x14] sm:$0xff]
        %v184 = vld [vmem:[%s153 + $0x1c] sm:$0xff]
        %v185 = vld [vmem:[%s153 + $0x24] sm:$0xf]
        %v186 = vmax.bf16 %v180, 0
        %v187 = vmax.bf16 %v181, 0
        %v188 = vmax.bf16 %v182, 0
        %v189 = vmax.bf16 %v183, 0
        %v190 = vmax.bf16 %v184, 0
        %v191 = vmax.bf16 %v185, 0
        %v192 = vld [vmem:[#allocation5] sm:$0xf]
        %v193 = vld [vmem:[#allocation5 + $0x4] sm:$0xf]
        %v194 = vld [vmem:[#allocation5 + $0x8] sm:$0xf]
        %v195 = vld [vmem:[#allocation5 + $0xc] sm:$0xf]
        %v196 = vld [vmem:[#allocation5 + $0x10] sm:$0xf]
        %v197 = vld [vmem:[#allocation5 + $0x14] sm:$0xf]
        %v198 = vld [vmem:[#allocation5 + $0x18] sm:$0xf]
        %v199 = vld [vmem:[#allocation5 + $0x1c] sm:$0xf]
        %v200 = vld [vmem:[#allocation5 + $0x20] sm:$0xf]
        %v201 = vld [vmem:[#allocation5 + $0x24] sm:$0xf]
        %v202 = vld [vmem:[#allocation5 + $0x28] sm:$0xf]
        %v203 = vld [vmem:[#allocation5 + $0x2c] sm:$0xf]
        %v204 = vld [vmem:[#allocation5 + $0x30] sm:$0xf]
        %v205 = vld [vmem:[#allocation5 + $0x34] sm:$0xf]
        %v206 = vld [vmem:[#allocation5 + $0x38] sm:$0xf]
        %v207 = vld [vmem:[#allocation5 + $0x3c] sm:$0xf]
        %v208 = vld [vmem:[#allocation5 + $0x40] sm:$0xf]
        %v209 = vld [vmem:[#allocation5 + $0x44] sm:$0xf]
        %v210 = vld [vmem:[#allocation5 + $0x48] sm:$0xf]
        %v211 = vld [vmem:[#allocation5 + $0x4c] sm:$0xf]
        %v212 = vld [vmem:[#allocation5 + $0x50] sm:$0xf]
        %v213 = vld [vmem:[#allocation5 + $0x54] sm:$0xf]
        %v214 = vld [vmem:[#allocation5 + $0x58] sm:$0xf]
        %v215 = vld [vmem:[#allocation5 + $0x5c] sm:$0xf]
        %v216 = vld [vmem:[#allocation5 + $0x60] sm:$0xf]
        %v217 = vld [vmem:[#allocation5 + $0x64] sm:$0xf]
        %v218 = vld [vmem:[#allocation5 + $0x68] sm:$0xf]
        %v219 = vld [vmem:[#allocation5 + $0x6c] sm:$0xf]
        %v220 = vld [vmem:[#allocation5 + $0x70] sm:$0xf]
        %v221 = vld [vmem:[#allocation5 + $0x74] sm:$0xf]
        %v222 = vld [vmem:[#allocation5 + $0x78] sm:$0xf]
        %v223 = vld [vmem:[#allocation5 + $0x7c] sm:$0xf]
        %v224 = vld [vmem:[#allocation5 + $0x80] sm:$0xf]
        %v225 = vld [vmem:[#allocation5 + $0x84] sm:$0xf]
        %v226 = vld [vmem:[#allocation5 + $0x88] sm:$0xf]
        %v227 = vld [vmem:[#allocation5 + $0x8c] sm:$0xf]
        %v228 = vld [vmem:[#allocation5 + $0x90] sm:$0xf]
        %v229 = vld [vmem:[#allocation5 + $0x94] sm:$0xf]
        %v230 = vld [vmem:[#allocation5 + $0x98] sm:$0xf]
        %v231 = vld [vmem:[#allocation5 + $0x9c] sm:$0xf]
        %v232 = vld [vmem:[#allocation5 + $0xa0] sm:$0xf]
        %v233 = vld [vmem:[#allocation5 + $0xa4] sm:$0xf]
        %v234 = vld [vmem:[#allocation5 + $0xa8] sm:$0xf]
        %v235 = vld [vmem:[#allocation5 + $0xac] sm:$0xf]
        %v236 = vld [vmem:[#allocation5 + $0xb0] sm:$0xf]
        %v237 = vld [vmem:[#allocation5 + $0xb4] sm:$0xf]
        %v238 = vld [vmem:[#allocation5 + $0xb8] sm:$0xf]
        %v239 = vld [vmem:[#allocation5 + $0xbc] sm:$0xf]
        %v240 = vld [vmem:[#allocation5 + $0xc0] sm:$0xf]
        %v241 = vld [vmem:[#allocation5 + $0xc4] sm:$0xf]
        %v242 = vld [vmem:[#allocation5 + $0xc8] sm:$0xf]
        %v243 = vld [vmem:[#allocation5 + $0xcc] sm:$0xf]
        %v244 = vld [vmem:[#allocation5 + $0xd0] sm:$0xf]
        %v245 = vld [vmem:[#allocation5 + $0xd4] sm:$0xf]
        %v246 = vld [vmem:[#allocation5 + $0xd8] sm:$0xf]
        %v247 = vld [vmem:[#allocation5 + $0xdc] sm:$0xf]
        %v248 = vld [vmem:[#allocation5 + $0xe0] sm:$0xf]
        %v249 = vld [vmem:[#allocation5 + $0xe4] sm:$0xf]
        %v250 = vld [vmem:[#allocation5 + $0xe8] sm:$0xf]
        %v251 = vld [vmem:[#allocation5 + $0xec] sm:$0xf]
        %v252 = vld [vmem:[#allocation5 + $0xf0] sm:$0xf]
        %v253 = vld [vmem:[#allocation5 + $0xf4] sm:$0xf]
        %v254 = vld [vmem:[#allocation5 + $0xf8] sm:$0xf]
        %v255 = vld [vmem:[#allocation5 + $0xfc] sm:$0xf]
        %v256 = vld [vmem:[#allocation5 + $0x100] sm:$0xf]
        %v257 = vld [vmem:[#allocation5 + $0x104] sm:$0xf]
        %v258 = vld [vmem:[#allocation5 + $0x108] sm:$0xf]
        %v259 = vld [vmem:[#allocation5 + $0x10c] sm:$0xf]
        %v260 = vld [vmem:[#allocation5 + $0x110] sm:$0xf]
        %v261 = vld [vmem:[#allocation5 + $0x114] sm:$0xf]
        %v262 = vld [vmem:[#allocation5 + $0x118] sm:$0xf]
        %v263 = vld [vmem:[#allocation5 + $0x11c] sm:$0xf]
        %v270 = vunpack.c.l.b16 %v186
        %v271 = vunpack.c.h.b16 %v186
        %v272 = vunpack.c.l.b16 %v187
        %v273 = vunpack.c.h.b16 %v187
        %v274 = vunpack.c.l.b16 %v188
        %v275 = vunpack.c.l.b16 %v189
        %v276 = vunpack.c.h.b16 %v189
        %v277 = vunpack.c.l.b16 %v190
        %v278 = vunpack.c.h.b16 %v190
        %v279 = vunpack.c.l.b16 %v191
        %v280 = vpack.c.b16 %v275, %v270
        %v281 = vpack.c.b16 %v276, %v271
        %v282 = vpack.c.b16 %v277, %v272
        %v283 = vpack.c.b16 %v278, %v273
        %v284 = vpack.c.b16 %v279, %v274
        %v361 = vunpack.c.l.b16 %v192
        %v362 = vunpack.c.l.b16 %v193
        %v363 = vunpack.c.l.b16 %v194
        %v364 = vunpack.c.l.b16 %v195
        %v365 = vunpack.c.l.b16 %v196
        %v366 = vunpack.c.l.b16 %v197
        %v367 = vunpack.c.l.b16 %v198
        %v368 = vunpack.c.l.b16 %v199
        %v369 = vunpack.c.l.b16 %v200
        %v370 = vunpack.c.l.b16 %v201
        %v371 = vunpack.c.l.b16 %v202
        %v372 = vunpack.c.l.b16 %v203
        %v373 = vunpack.c.l.b16 %v204
        %v374 = vunpack.c.l.b16 %v205
        %v375 = vunpack.c.l.b16 %v206
        %v376 = vunpack.c.l.b16 %v207
        %v377 = vunpack.c.l.b16 %v208
        %v378 = vunpack.c.l.b16 %v209
        %v379 = vunpack.c.l.b16 %v210
        %v380 = vunpack.c.l.b16 %v211
        %v381 = vunpack.c.l.b16 %v212
        %v382 = vunpack.c.l.b16 %v213
        %v383 = vunpack.c.l.b16 %v214
        %v384 = vunpack.c.l.b16 %v215
        %v385 = vunpack.c.l.b16 %v216
        %v386 = vunpack.c.l.b16 %v217
        %v387 = vunpack.c.l.b16 %v218
        %v388 = vunpack.c.l.b16 %v219
        %v389 = vunpack.c.l.b16 %v220
        %v390 = vunpack.c.l.b16 %v221
        %v391 = vunpack.c.l.b16 %v222
        %v392 = vunpack.c.l.b16 %v223
        %v393 = vunpack.c.l.b16 %v224
        %v394 = vunpack.c.l.b16 %v225
        %v395 = vunpack.c.l.b16 %v226
        %v396 = vunpack.c.l.b16 %v227
        %v397 = vunpack.c.l.b16 %v228
        %v398 = vunpack.c.l.b16 %v229
        %v399 = vunpack.c.l.b16 %v230
        %v400 = vunpack.c.l.b16 %v231
        %v401 = vunpack.c.l.b16 %v232
        %v402 = vunpack.c.l.b16 %v233
        %v403 = vunpack.c.l.b16 %v234
        %v404 = vunpack.c.l.b16 %v235
        %v405 = vunpack.c.l.b16 %v236
        %v406 = vunpack.c.l.b16 %v237
        %v407 = vunpack.c.l.b16 %v238
        %v408 = vunpack.c.l.b16 %v239
        %v409 = vunpack.c.l.b16 %v240
        %v410 = vunpack.c.l.b16 %v241
        %v411 = vunpack.c.l.b16 %v242
        %v412 = vunpack.c.l.b16 %v243
        %v413 = vunpack.c.l.b16 %v244
        %v414 = vunpack.c.l.b16 %v245
        %v415 = vunpack.c.l.b16 %v246
        %v416 = vunpack.c.l.b16 %v247
        %v417 = vunpack.c.l.b16 %v248
        %v418 = vunpack.c.l.b16 %v249
        %v419 = vunpack.c.l.b16 %v250
        %v420 = vunpack.c.l.b16 %v251
        %v421 = vunpack.c.l.b16 %v252
        %v422 = vunpack.c.l.b16 %v253
        %v423 = vunpack.c.l.b16 %v254
        %v424 = vunpack.c.l.b16 %v255
        %v425 = vunpack.c.l.b16 %v256
        %v426 = vunpack.c.l.b16 %v257
        %v427 = vunpack.c.l.b16 %v258
        %v428 = vunpack.c.l.b16 %v259
        %v429 = vunpack.c.l.b16 %v260
        %v430 = vunpack.c.l.b16 %v261
        %v431 = vunpack.c.l.b16 %v262
        %v432 = vunpack.c.l.b16 %v263
        %v433 = vpack.c.b16 %v362, %v361
        %v434 = vpack.c.b16 %v364, %v363
        %v435 = vpack.c.b16 %v366, %v365
        %v436 = vpack.c.b16 %v368, %v367
        %v437 = vpack.c.b16 %v370, %v369
        %v438 = vpack.c.b16 %v372, %v371
        %v439 = vpack.c.b16 %v374, %v373
        %v440 = vpack.c.b16 %v376, %v375
        %v441 = vpack.c.b16 %v378, %v377
        %v442 = vpack.c.b16 %v380, %v379
        %v443 = vpack.c.b16 %v382, %v381
        %v444 = vpack.c.b16 %v384, %v383
        %v445 = vpack.c.b16 %v386, %v385
        %v446 = vpack.c.b16 %v388, %v387
        %v447 = vpack.c.b16 %v390, %v389
        %v448 = vpack.c.b16 %v392, %v391
        %v449 = vpack.c.b16 %v394, %v393
        %v450 = vpack.c.b16 %v396, %v395
        %v451 = vpack.c.b16 %v398, %v397
        %v452 = vpack.c.b16 %v400, %v399
        %v453 = vpack.c.b16 %v402, %v401
        %v454 = vpack.c.b16 %v404, %v403
        %v455 = vpack.c.b16 %v406, %v405
        %v456 = vpack.c.b16 %v408, %v407
        %v457 = vpack.c.b16 %v410, %v409
        %v458 = vpack.c.b16 %v412, %v411
        %v459 = vpack.c.b16 %v414, %v413
        %v460 = vpack.c.b16 %v416, %v415
        %v461 = vpack.c.b16 %v418, %v417
        %v462 = vpack.c.b16 %v420, %v419
        %v463 = vpack.c.b16 %v422, %v421
        %v464 = vpack.c.b16 %v424, %v423
        %v465 = vpack.c.b16 %v426, %v425
        %v466 = vpack.c.b16 %v428, %v427
        %v467 = vpack.c.b16 %v430, %v429
        %v468 = vpack.c.b16 %v432, %v431
        %vm505 = vcmask 523264
        %v507 = vsel %vm505, %v284, 0
        %509 = vmatprep.subr.bf16.mxu0 0
        %510 = vmatpush1.bf16.msra.mxu0 %v433
        %511 = vmatprep.subr.bf16.mxu0 0
        %512 = vmatpush1.bf16.msra.mxu0 %v434
        %513 = vmatprep.subr.bf16.mxu0 0
        %514 = vmatpush1.bf16.msra.mxu0 %v435
        %515 = vmatprep.subr.bf16.mxu0 0
        %516 = vmatpush1.bf16.msra.mxu0 %v436
        %517 = vmatprep.subr.bf16.mxu0 0
        %518 = vmatpush1.bf16.msra.mxu0 %v437
        %519 = vmatprep.subr.bf16.mxu0 0
        %520 = vmatpush1.bf16.msra.mxu0 %v438
        %521 = vmatprep.subr.bf16.mxu0 0
        %522 = vmatpush1.bf16.msra.mxu0 %v439
        %523 = vmatprep.subr.bf16.mxu0 0
        %524 = vmatpush1.bf16.msra.mxu0 %v440
        %525 = vmatprep.subr.bf16.mxu0 0
        %526 = vmatpush1.bf16.msra.mxu0 %v441
        %527 = vmatprep.subr.bf16.mxu0 0
        %528 = vmatpush1.bf16.msra.mxu0 %v442
        %529 = vmatprep.subr.bf16.mxu0 0
        %530 = vmatpush1.bf16.msra.mxu0 %v443
        %531 = vmatprep.subr.bf16.mxu0 0
        %532 = vmatpush1.bf16.msra.mxu0 %v444
        %533 = vmatprep.subr.bf16.mxu0 0
        %534 = vmatpush1.bf16.msra.mxu0 %v445
        %535 = vmatprep.subr.bf16.mxu0 0
        %536 = vmatpush1.bf16.msra.mxu0 %v446
        %537 = vmatprep.subr.bf16.mxu0 0
        %538 = vmatpush1.bf16.msra.mxu0 %v447
        %539 = vmatprep.subr.bf16.mxu0 0
        %540 = vmatpush1.bf16.msra.mxu0 %v448
        %541 = vmatprep.mubr.bf16.mxu0 %v281
        %542 = vmatmul.mubr.bf16.gmra.mrb[0].mxu0 %v280
        %v543 = vpop.f32.mrb[0].mxu0
        %v544 = vadd.f32 0.0, %v543
        %v545 = vpop.f32.mrb[0].mxu0
        %v546 = vpop.f32.mrb[0].mxu0
        %v547 = vadd.f32 0.0, %v546
        %v548 = vpop.f32.mrb[0].mxu0
        %549 = vdwg.mxu0
        %550 = vmatprep.subr.bf16.mxu0 0
        %551 = vmatpush1.bf16.msra.mxu0 %v449
        %552 = vmatprep.subr.bf16.mxu0 0
        %553 = vmatpush1.bf16.msra.mxu0 %v450
        %554 = vmatprep.subr.bf16.mxu0 0
        %555 = vmatpush1.bf16.msra.mxu0 %v451
        %556 = vmatprep.subr.bf16.mxu0 0
        %557 = vmatpush1.bf16.msra.mxu0 %v452
        %558 = vmatprep.subr.bf16.mxu0 0
        %559 = vmatpush1.bf16.msra.mxu0 %v453
        %560 = vmatprep.subr.bf16.mxu0 0
        %561 = vmatpush1.bf16.msra.mxu0 %v454
        %562 = vmatprep.subr.bf16.mxu0 0
        %563 = vmatpush1.bf16.msra.mxu0 %v455
        %564 = vmatprep.subr.bf16.mxu0 0
        %565 = vmatpush1.bf16.msra.mxu0 %v456
        %566 = vmatprep.subr.bf16.mxu0 0
        %567 = vmatpush1.bf16.msra.mxu0 %v457
        %568 = vmatprep.subr.bf16.mxu0 0
        %569 = vmatpush1.bf16.msra.mxu0 %v458
        %570 = vmatprep.subr.bf16.mxu0 0
        %571 = vmatpush1.bf16.msra.mxu0 %v459
        %572 = vmatprep.subr.bf16.mxu0 0
        %573 = vmatpush1.bf16.msra.mxu0 %v460
        %574 = vmatprep.subr.bf16.mxu0 0
        %575 = vmatpush1.bf16.msra.mxu0 %v461
        %576 = vmatprep.subr.bf16.mxu0 0
        %577 = vmatpush1.bf16.msra.mxu0 %v462
        %578 = vmatprep.subr.bf16.mxu0 0
        %579 = vmatpush1.bf16.msra.mxu0 %v463
        %580 = vmatprep.subr.bf16.mxu0 0
        %581 = vmatpush1.bf16.msra.mxu0 %v464
        %582 = vmatprep.mubr.bf16.mxu0 %v283
        %583 = vmatmul.mubr.bf16.gmra.mrb[0].mxu0 %v282
        %v584 = vpop.f32.mrb[0].mxu0
        %v585 = vadd.f32 %v544, %v584
        %v586 = vpop.f32.mrb[0].mxu0
        %v587 = vpop.f32.mrb[0].mxu0
        %v588 = vadd.f32 %v547, %v587
        %v589 = vpop.f32.mrb[0].mxu0
        %590 = vdwg.mxu0
        %591 = vmatprep.subr.bf16.mxu0 0
        %592 = vmatpush1.bf16.msra.mxu0 %v465
        %593 = vmatprep.subr.bf16.mxu0 0
        %594 = vmatpush1.bf16.msra.mxu0 %v466
        %595 = vmatprep.subr.bf16.mxu0 0
        %596 = vmatpush1.bf16.msra.mxu0 %v467
        %597 = vmatprep.subr.bf16.mxu0 0
        %598 = vmatpush1.bf16.msra.mxu0 %v468
        %599 = vmatprep.subr.bf16.mxu0 0
        %600 = vmatpush1.bf16.msra.mxu0 0
        %601 = vmatprep.subr.bf16.mxu0 0
        %602 = vmatpush1.bf16.msra.mxu0 0
        %603 = vmatprep.subr.bf16.mxu0 0
        %604 = vmatpush1.bf16.msra.mxu0 0
        %605 = vmatprep.subr.bf16.mxu0 0
        %606 = vmatpush1.bf16.msra.mxu0 0
        %607 = vmatprep.subr.bf16.mxu0 0
        %608 = vmatpush1.bf16.msra.mxu0 0
        %609 = vmatprep.subr.bf16.mxu0 0
        %610 = vmatpush1.bf16.msra.mxu0 0
        %611 = vmatprep.subr.bf16.mxu0 0
        %612 = vmatpush1.bf16.msra.mxu0 0
        %613 = vmatprep.subr.bf16.mxu0 0
        %614 = vmatpush1.bf16.msra.mxu0 0
        %615 = vmatprep.subr.bf16.mxu0 0
        %616 = vmatpush1.bf16.msra.mxu0 0
        %617 = vmatprep.subr.bf16.mxu0 0
        %618 = vmatpush1.bf16.msra.mxu0 0
        %619 = vmatprep.subr.bf16.mxu0 0
        %620 = vmatpush1.bf16.msra.mxu0 0
        %621 = vmatprep.subr.bf16.mxu0 0
        %622 = vmatpush1.bf16.msra.mxu0 0
        %623 = vmatprep.mubr.bf16.mxu0 0
        %624 = vmatmul.mubr.bf16.gmra.mrb[0].mxu0 %v507
        %v625 = vpop.f32.mrb[0].mxu0
        %v626 = vadd.f32 %v585, %v625
        %v627 = vpop.f32.mrb[0].mxu0
        %v628 = vpop.f32.mrb[0].mxu0
        %v629 = vadd.f32 %v588, %v628
        %v630 = vpop.f32.mrb[0].mxu0
        %631 = vdwg.mxu0
        %v632 = vadd.f32 %v626, %v629
        %v633 = vrot.slane %v632, 4
        %v634 = vadd.f32 %v632, %v633
        %v635 = vrot.slane %v634, 2
        %v636 = vadd.f32 %v634, %v635
        %v637 = vrot.slane %v636, 1
        %v638 = vadd.f32 %v636, %v637
        %v639 = vmul.f32 %v626, %v626
        %v640 = vmul.f32 %v629, %v629
        %v641 = vadd.f32 %v639, %v640
        %v642 = vrot.slane %v641, 4
        %v643 = vadd.f32 %v641, %v642
        %v644 = vrot.slane %v643, 2
        %v645 = vadd.f32 %v643, %v644
        %v646 = vrot.slane %v645, 1
        %v647 = vadd.f32 %v645, %v646
        %vm648 = vcmask 1040384
        %v649 = vsel %vm648, %v638, %v647
        %650 = vst [vmem:[%s177] sm:$0x3] %v649
        %s651 = sand.u32 %s75, 1
        %s652 = scalar_lea.sflag [#allocation4], %s651
        %s653 = sand.u32 %s75, 1
        %s654 = smul.addr %s653, 2
        %s655 = scalar_lea.vmem [#allocation7], %s654
        // Predicated region
        $region37: #{tpu_custom_call.1} parent=27 // pred_check
          %p656 = pneg %p85
        $region38: #{tpu_custom_call.1} parent=27 // pred_check_branch
          %658 = sbr.rel (%p656) target = $region40
        $region39: #{tpu_custom_call.1} parent=27 // pred_region
          %s660 = ssub.s32 32, 32
          %661 = vsyncadd %s652, %s660
          %s662 = smul.addr %s20, 32
          %s663 = scalar_lea.hbm %s2, %s662
          %s665 = sshll.u32 %s655, 4
          %s666 = int_to_ptr.vmem [resolvable:$true] %s665
          %668 = dma.vmem_to_hbm [thread:$0]  %s666, 32, %s663, %s652
        $region40: #{tpu_custom_call.1} parent=27 // pred_fallthru
          _
      $region28: #{tpu_custom_call.1} parent=5 // pred_fallthru
        _
      %p669 = scmp.le.s32.totalorder 2, %s15
      // Predicated region
      $region41: #{tpu_custom_call.1} parent=5 // pred_check
        %p670 = pneg %p669
      $region42: #{tpu_custom_call.1} parent=5 // pred_check_branch
        %672 = sbr.rel (%p670) target = $region44
      $region43: #{tpu_custom_call.1} parent=5 // pred_region
        %s673 = ssub.s32 %s15, 2
        // Predicated region
        $region45: #{tpu_custom_call.1} parent=43 // pred_check
          %p674 = pneg %p91
        $region46: #{tpu_custom_call.1} parent=43 // pred_check_branch
          %676 = sbr.rel (%p674) target = $region48
        $region47: #{tpu_custom_call.1} parent=43 // pred_region
          %s677 = sand.u32 %s76, 1
          %s678 = scalar_lea.sflag [#allocation4], %s677
          %s679 = sand.u32 %s76, 1
          %s680 = smul.addr %s679, 2
          %s681 = scalar_lea.vmem [#allocation7], %s680
          %682 = dma.done %s678, 32
        $region48: #{tpu_custom_call.1} parent=43 // pred_fallthru
          _
      $region44: #{tpu_custom_call.1} parent=5 // pred_fallthru
        _
    $region6: #{tpu_custom_call.1} parent=1 // loop_footer
      %s19 = sadd.s32 1, %s15
    $region7: #{tpu_custom_call.1} parent=1 // loop_footer_branch
      %14 = sbr.rel target = $region3
    $region8: #{tpu_custom_call.1} parent=1 // loop_exit
      _
    %683 = vsyncpa [#allocation3], 1
    %s684 = scalar_lea.sflag [#allocation3], 1
    %685 = vsyncpa %s684, 1
    %686 = vsyncpa [#allocation6], 1
    %687 = vsyncpa [#allocation4], 1
    %s688 = scalar_lea.sflag [#allocation4], 1
    %689 = vsyncpa %s688, 1

</llo_original>
